<compile_context>
chip_gen: v6e
topology: v6e:2x2x1
jax: 0.10.0
libtpu: 0.0.40
codegen_flags: <defaults>
</compile_context>

<pallas_src>
import jax
import jax.numpy as jnp
from jax.experimental import pallas as pl
from jax.experimental.pallas import tpu as pltpu

# ---- model hyper-params (small, consistent with the module) ----
INPUT_DIM = 2          # input_scale has 2 entries -> x has 2 features
HIDDEN_DIM = 32
LATENT_DIM = 16
OUTPUT_DIM = 3         # output_scale has 3 entries
NUM_COMPONENTS = 5
HEAD_DIM = NUM_COMPONENTS + 2 * NUM_COMPONENTS * OUTPUT_DIM   # 5 + 15 + 15 = 35
BATCH = 8

INPUT_SCALE = jnp.array([1280.0, 720.0], dtype=jnp.float32)          # [2]
OUTPUT_SCALE = jnp.array([40.0, 20.0, 150.0], dtype=jnp.float32)     # [3]


def mdn_kernel(x_ref,
               w1_ref, b1_ref, w2_ref, b2_ref, wh_ref, bh_ref,
               out_ref):
    """Transposed dataflow: features on sublanes, batch on lanes."""
    K, Do = NUM_COMPONENTS, OUTPUT_DIM

    # ---- BaseNetwork ----
    # fc1: contraction dim is 2 -> two VPU broadcast FMAs, no MXU round trip.
    # (input scaling already folded into w1.)
    x = x_ref[...]                                     # [2, TB]
    w1 = w1_ref[...]                                   # [H, 2]
    h = w1[:, 0:1] * x[0:1, :] + w1[:, 1:2] * x[1:2, :] + b1_ref[...]   # [H, TB]
    h = jnp.maximum(h, 0.0)

    # fc2 on the MXU: [H,H] @ [H,TB]
    h = jnp.dot(w2_ref[...], h, preferred_element_type=jnp.float32) + b2_ref[...]
    h = jnp.maximum(h, 0.0)

    # fc3 + all three mixture heads, folded into ONE matmul at trace time:
    # head rows 0..4 = pi logits, 5..19 = mu (scale folded), 20..34 = log sigma
    # (log(output_scale) folded into the bias).
    head = jnp.dot(wh_ref[...], h, preferred_element_type=jnp.float32) + bh_ref[...]  # [35, TB]

    # ---- masked whole-vreg epilogue (no slices / concatenate) ----
    row = jax.lax.broadcasted_iota(jnp.int32, head.shape, 0)            # [35, TB]
    is_pi = row < K
    is_mu = (row >= K) & (row < K + K * Do)

    m = jnp.max(jnp.where(is_pi, head, -jnp.inf), axis=0, keepdims=True)  # [1, TB]
    # pi rows: exp(logit - m); mu rows: exp(0) (discarded, avoids overflow);
    # sigma rows: exp(log sigma).
    shift = jnp.where(is_pi, m, jnp.where(is_mu, head, 0.0))
    e = jnp.exp(head - shift)

    denom = jnp.sum(jnp.where(is_pi, e, 0.0), axis=0, keepdims=True)      # [1, TB]
    r = pl.reciprocal(denom, approx=True)              # EUP vrcp (free slot)
    r = r * (2.0 - denom * r)                          # one Newton step -> full f32 accuracy

    # pi rows -> e*r ; sigma rows -> e ; mu rows -> head.  Single lane-dense store.
    out_ref[...] = jnp.where(is_mu, head, e * jnp.where(is_pi, r, 1.0))


def init_params(key):
    """Deterministic parameter init, shapes per the PyTorch __init__ (weights stored
    as [in, out] so the wrapper's trace-time algebra reads like x @ W + b)."""
    def linear(key, fan_in, fan_out):
        kw, kb = jax.random.split(key)
        bound = 1.0 / jnp.sqrt(fan_in)
        w = jax.random.uniform(kw, (fan_in, fan_out), jnp.float32, -bound, bound)
        b = jax.random.uniform(kb, (1, fan_out), jnp.float32, -bound, bound)
        return w, b

    keys = jax.random.split(key, 6)
    w1, b1 = linear(keys[0], INPUT_DIM, HIDDEN_DIM)
    w2, b2 = linear(keys[1], HIDDEN_DIM, HIDDEN_DIM)
    w3, b3 = linear(keys[2], HIDDEN_DIM, LATENT_DIM)
    wpi, bpi = linear(keys[3], LATENT_DIM, NUM_COMPONENTS)
    wmu, bmu = linear(keys[4], LATENT_DIM, NUM_COMPONENTS * OUTPUT_DIM)
    wsg, bsg = linear(keys[5], LATENT_DIM, NUM_COMPONENTS * OUTPUT_DIM)
    return (w1, b1, w2, b2, w3, b3, wpi, bpi, wmu, bmu, wsg, bsg)


def _pick_batch_tile(B):
    """Batch tile on the lane axis.

    Small batches: one full-extent block (satisfies the (8,128) rule via 'equal
    full dim').  Larger lane-aligned batches: a multiple-of-128 tile that gives
    >= 2 grid steps (feeds both TensorCores on v7x) and stays <= 4096 lanes
    (per-tile VMEM is ~150 B/row, so this is far under any VMEM limit)."""
    max_tb = 4096
    if B < 256 or B % 128 != 0:
        return B
    tb = min(max_tb, max(128, (B // 2) // 128 * 128))
    while B % tb:
        tb -= 128
    return tb


def mdn_forward(x, params):
    (w1, b1, w2, b2, w3, b3, wpi, bpi, wmu, bmu, wsg, bsg) = params
    B = x.shape[0]
    K, Do = NUM_COMPONENTS, OUTPUT_DIM
    out_scale_tiled = jnp.tile(OUTPUT_SCALE, (K,)).reshape(1, K * Do)      # [1, 15]

    # ---- trace-time algebra (scales are positive; pure re-parameterization) ----
    w1f = w1 / INPUT_SCALE.reshape(INPUT_DIM, 1)        # absorbs x /= input_scale
    wmu_f = wmu * out_scale_tiled                        # absorbs output_scale * mu
    bmu_f = bmu * out_scale_tiled
    bsg_f = bsg + jnp.log(out_scale_tiled)               # absorbs output_scale * sigma

    wh = jnp.concatenate([wpi, wmu_f, wsg], axis=1)      # [LATENT, 35]
    bh = jnp.concatenate([bpi, bmu_f, bsg_f], axis=1)    # [1, 35]

    # fold fc3 into the head (no activation between fc3 and the mixture heads)
    w3h = w3 @ wh                                        # [HIDDEN, 35]
    b3h = b3 @ wh + bh                                   # [1, 35]

    # ---- transpose for the batch-on-lanes layout ----
    xt = x.T                                             # [2, B]
    w1t, b1t = w1f.T, b1.T                               # [H, 2], [H, 1]
    w2t, b2t = w2.T, b2.T                                # [H, H], [H, 1]
    wht, bht = w3h.T, b3h.T                              # [35, H], [35, 1]

    TB = _pick_batch_tile(B)
    assert B % TB == 0
    grid = (B // TB,)

    batch_spec = lambda rows: pl.BlockSpec((rows, TB), lambda i: (0, i))
    full_spec = lambda shape: pl.BlockSpec(shape, lambda i: (0, 0))   # VMEM-resident weights

    flops = 2 * B * (INPUT_DIM * HIDDEN_DIM + HIDDEN_DIM * HIDDEN_DIM
                     + HIDDEN_DIM * HEAD_DIM)
    bytes_accessed = 4 * (B * (INPUT_DIM + HEAD_DIM)
                          + HIDDEN_DIM * (INPUT_DIM + HIDDEN_DIM + 2)
                          + HEAD_DIM * (HIDDEN_DIM + 1))

    out_packed = pl.pallas_call(
        mdn_kernel,
        out_shape=jax.ShapeDtypeStruct((HEAD_DIM, B), jnp.float32),
        grid=grid,
        in_specs=[
            batch_spec(INPUT_DIM),
            full_spec((HIDDEN_DIM, INPUT_DIM)), full_spec((HIDDEN_DIM, 1)),
            full_spec((HIDDEN_DIM, HIDDEN_DIM)), full_spec((HIDDEN_DIM, 1)),
            full_spec((HEAD_DIM, HIDDEN_DIM)), full_spec((HEAD_DIM, 1)),
        ],
        out_specs=batch_spec(HEAD_DIM),
        compiler_params=pltpu.CompilerParams(
            dimension_semantics=("parallel",)),
        cost_estimate=pl.CostEstimate(
            flops=flops,
            transcendentals=B * (HEAD_DIM + 1),
            bytes_accessed=bytes_accessed),
    )(xt, w1t, b1t, w2t, b2t, wht, bht)

    # transpose back + split / view(-1, num_components, output_dim) -- glue outside
    out = out_packed.T                                   # [B, 35]
    pi = out[:, 0:K]
    mu = out[:, K:K + K * Do].reshape(B, K, Do)
    sigma = out[:, K + K * Do:K + 2 * K * Do].reshape(B, K, Do)
    return pi, mu, sigma


def mdn_forward_ref(x, params):
    """Pure-JAX reference for correctness checking (unfolded params)."""
    (w1, b1, w2, b2, w3, b3, wpi, bpi, wmu, bmu, wsg, bsg) = params
    xs = x / INPUT_SCALE.reshape(1, INPUT_DIM)
    h = jnp.maximum(xs @ w1 + b1, 0.0)
    h = jnp.maximum(h @ w2 + b2, 0.0)
    z = h @ w3 + b3
    pi = jax.nn.softmax(z @ wpi + bpi, axis=1)
    mu = (z @ wmu + bmu).reshape(-1, NUM_COMPONENTS, OUTPUT_DIM)
    sigma = jnp.exp(z @ wsg + bsg).reshape(-1, NUM_COMPONENTS, OUTPUT_DIM)
    return pi, OUTPUT_SCALE * mu, OUTPUT_SCALE * sigma


def _check(x, params):
    pi, mu, sigma = mdn_forward(x, params)
    jax.block_until_ready((pi, mu, sigma))
    pi_r, mu_r, sigma_r = mdn_forward_ref(x, params)
    B = x.shape[0]
    assert pi.shape == (B, NUM_COMPONENTS)
    assert mu.shape == (B, NUM_COMPONENTS, OUTPUT_DIM)
    assert sigma.shape == (B, NUM_COMPONENTS, OUTPUT_DIM)
    assert jnp.allclose(pi, pi_r, atol=1e-5, rtol=1e-5)
    assert jnp.allclose(mu, mu_r, atol=1e-4, rtol=1e-4)
    assert jnp.allclose(sigma, sigma_r, atol=1e-4, rtol=1e-4)


if __name__ == "__main__":
    key = jax.random.PRNGKey(0)
    kx, kp, kx2 = jax.random.split(key, 3)

    params = init_params(kp)

    # pixel-like inputs in [0, 1280) x [0, 720)
    scale = jnp.array([1280.0, 720.0], dtype=jnp.float32)
    x_small = jax.random.uniform(kx, (BATCH, INPUT_DIM), jnp.float32) * scale
    _check(x_small, params)

    # also exercise the multi-step lane-tiled grid path (TB=128, grid=(2,))
    x_big = jax.random.uniform(kx2, (256, INPUT_DIM), jnp.float32) * scale
    _check(x_big, params)

    print("KERNEL_OK")
</pallas_src>

<mosaic_0001>
module attributes {stable_mosaic.version = 11 : i64} {
  func.func @mdn_kernel(%arg0: i32, %arg1: memref<2x8xf32, #tpu.memory_space<vmem>>, %arg2: memref<32x2xf32, #tpu.memory_space<vmem>>, %arg3: memref<32x1xf32, #tpu.memory_space<vmem>>, %arg4: memref<32x32xf32, #tpu.memory_space<vmem>>, %arg5: memref<32x1xf32, #tpu.memory_space<vmem>>, %arg6: memref<35x32xf32, #tpu.memory_space<vmem>>, %arg7: memref<35x1xf32, #tpu.memory_space<vmem>>, %arg8: memref<35x8xf32, #tpu.memory_space<vmem>>) attributes {dimension_semantics = [#tpu.dimension_semantics<parallel>], iteration_bounds = array<i64: 1>, scalar_prefetch = 0 : i64, scratch_operands = 0 : i64, tpu.core_type = #tpu.core_type<tc>, window_params = [{transform_indices = @transform_0, window_bounds = array<i64: 2, 8>}, {pipeline_mode = #tpu.pipeline_mode<synchronous>, transform_indices = @transform_1, window_bounds = array<i64: 32, 2>}, {pipeline_mode = #tpu.pipeline_mode<synchronous>, transform_indices = @transform_2, window_bounds = array<i64: 32, 1>}, {pipeline_mode = #tpu.pipeline_mode<synchronous>, transform_indices = @transform_3, window_bounds = array<i64: 32, 32>}, {pipeline_mode = #tpu.pipeline_mode<synchronous>, transform_indices = @transform_4, window_bounds = array<i64: 32, 1>}, {pipeline_mode = #tpu.pipeline_mode<synchronous>, transform_indices = @transform_5, window_bounds = array<i64: 35, 32>}, {pipeline_mode = #tpu.pipeline_mode<synchronous>, transform_indices = @transform_6, window_bounds = array<i64: 35, 1>}, {transform_indices = @transform_7, window_bounds = array<i64: 35, 8>}]} {
    %c0 = arith.constant 0 : index
    %c0_0 = arith.constant 0 : index
    %0 = vector.load %arg1[%c0, %c0_0] : memref<2x8xf32, #tpu.memory_space<vmem>>, vector<2x8xf32>
    %c0_1 = arith.constant 0 : index
    %c0_2 = arith.constant 0 : index
    %1 = vector.load %arg2[%c0_1, %c0_2] : memref<32x2xf32, #tpu.memory_space<vmem>>, vector<32x2xf32>
    %2 = vector.extract_strided_slice %1 {offsets = [0, 0], sizes = [32, 1], strides = [1, 1]} : vector<32x2xf32> to vector<32x1xf32>
    %3 = vector.extract_strided_slice %0 {offsets = [0, 0], sizes = [1, 8], strides = [1, 1]} : vector<2x8xf32> to vector<1x8xf32>
    %4 = vector.broadcast %2 : vector<32x1xf32> to vector<32x8xf32>
    %5 = vector.broadcast %3 : vector<1x8xf32> to vector<32x8xf32>
    %6 = arith.mulf %4, %5 : vector<32x8xf32>
    %7 = vector.extract_strided_slice %1 {offsets = [0, 1], sizes = [32, 1], strides = [1, 1]} : vector<32x2xf32> to vector<32x1xf32>
    %8 = vector.extract_strided_slice %0 {offsets = [1, 0], sizes = [1, 8], strides = [1, 1]} : vector<2x8xf32> to vector<1x8xf32>
    %9 = vector.broadcast %7 : vector<32x1xf32> to vector<32x8xf32>
    %10 = vector.broadcast %8 : vector<1x8xf32> to vector<32x8xf32>
    %11 = arith.mulf %9, %10 : vector<32x8xf32>
    %12 = arith.addf %6, %11 : vector<32x8xf32>
    %c0_3 = arith.constant 0 : index
    %c0_4 = arith.constant 0 : index
    %13 = vector.load %arg3[%c0_3, %c0_4] : memref<32x1xf32, #tpu.memory_space<vmem>>, vector<32x1xf32>
    %14 = vector.broadcast %13 : vector<32x1xf32> to vector<32x8xf32>
    %15 = arith.addf %12, %14 : vector<32x8xf32>
    %cst = arith.constant 0.000000e+00 : f32
    %16 = vector.broadcast %cst : f32 to vector<32x8xf32>
    %17 = arith.maximumf %15, %16 : vector<32x8xf32>
    %c0_5 = arith.constant 0 : index
    %c0_6 = arith.constant 0 : index
    %18 = vector.load %arg4[%c0_5, %c0_6] : memref<32x32xf32, #tpu.memory_space<vmem>>, vector<32x32xf32>
    %cst_7 = arith.constant dense<0.000000e+00> : vector<32x8xf32>
    %19 = tpu.matmul %18, %17, %cst_7 {dimension_numbers = #tpu.dot_dimension_numbers<[1], [0], [0], [1], [0, 0, 1, 1], [], []>} : vector<32x32xf32>, vector<32x8xf32>, vector<32x8xf32> -> vector<32x8xf32>
    %c0_8 = arith.constant 0 : index
    %c0_9 = arith.constant 0 : index
    %20 = vector.load %arg5[%c0_8, %c0_9] : memref<32x1xf32, #tpu.memory_space<vmem>>, vector<32x1xf32>
    %21 = vector.broadcast %20 : vector<32x1xf32> to vector<32x8xf32>
    %22 = arith.addf %19, %21 : vector<32x8xf32>
    %cst_10 = arith.constant 0.000000e+00 : f32
    %23 = vector.broadcast %cst_10 : f32 to vector<32x8xf32>
    %24 = arith.maximumf %22, %23 : vector<32x8xf32>
    %c0_11 = arith.constant 0 : index
    %c0_12 = arith.constant 0 : index
    %25 = vector.load %arg6[%c0_11, %c0_12] : memref<35x32xf32, #tpu.memory_space<vmem>>, vector<35x32xf32>
    %cst_13 = arith.constant dense<0.000000e+00> : vector<35x8xf32>
    %26 = tpu.matmul %25, %24, %cst_13 {dimension_numbers = #tpu.dot_dimension_numbers<[1], [0], [0], [1], [0, 0, 1, 1], [], []>} : vector<35x32xf32>, vector<32x8xf32>, vector<35x8xf32> -> vector<35x8xf32>
    %c0_14 = arith.constant 0 : index
    %c0_15 = arith.constant 0 : index
    %27 = vector.load %arg7[%c0_14, %c0_15] : memref<35x1xf32, #tpu.memory_space<vmem>>, vector<35x1xf32>
    %28 = vector.broadcast %27 : vector<35x1xf32> to vector<35x8xf32>
    %29 = arith.addf %26, %28 : vector<35x8xf32>
    %30 = tpu.iota {dimensions = array<i32: 0>} : vector<35x8xi32>
    %c5_i32 = arith.constant 5 : i32
    %31 = vector.broadcast %c5_i32 : i32 to vector<35x8xi32>
    %32 = arith.cmpi slt, %30, %31 : vector<35x8xi32>
    %c5_i32_16 = arith.constant 5 : i32
    %33 = vector.broadcast %c5_i32_16 : i32 to vector<35x8xi32>
    %34 = arith.cmpi sge, %30, %33 : vector<35x8xi32>
    %c20_i32 = arith.constant 20 : i32
    %35 = vector.broadcast %c20_i32 : i32 to vector<35x8xi32>
    %36 = arith.cmpi slt, %30, %35 : vector<35x8xi32>
    %37 = arith.andi %34, %36 : vector<35x8xi1>
    %cst_17 = arith.constant 0xFF800000 : f32
    %38 = vector.broadcast %cst_17 : f32 to vector<35x8xf32>
    %39 = arith.select %32, %29, %38 : vector<35x8xi1>, vector<35x8xf32>
    %cst_18 = arith.constant dense<0xFF800000> : vector<8xf32>
    %40 = vector.multi_reduction <maximumf>, %39, %cst_18 [0] : vector<35x8xf32> to vector<8xf32>
    %41 = vector.shape_cast %40 : vector<8xf32> to vector<1x8xf32>
    %cst_19 = arith.constant 0.000000e+00 : f32
    %42 = vector.broadcast %cst_19 : f32 to vector<35x8xf32>
    %43 = arith.select %37, %29, %42 : vector<35x8xi1>, vector<35x8xf32>
    %44 = vector.shape_cast %41 : vector<1x8xf32> to vector<1x8xf32>
    %45 = vector.broadcast %44 : vector<1x8xf32> to vector<35x8xf32>
    %46 = arith.select %32, %45, %43 : vector<35x8xi1>, vector<35x8xf32>
    %47 = arith.subf %29, %46 : vector<35x8xf32>
    %48 = math.exp %47 : vector<35x8xf32>
    %cst_20 = arith.constant 0.000000e+00 : f32
    %49 = vector.broadcast %cst_20 : f32 to vector<35x8xf32>
    %50 = arith.select %32, %48, %49 : vector<35x8xi1>, vector<35x8xf32>
    %cst_21 = arith.constant dense<0.000000e+00> : vector<8xf32>
    %51 = vector.multi_reduction <add>, %50, %cst_21 [0] : vector<35x8xf32> to vector<8xf32>
    %52 = vector.shape_cast %51 : vector<8xf32> to vector<1x8xf32>
    %53 = tpu.reciprocal %52 {approx = true} : vector<1x8xf32> -> vector<1x8xf32>
    %54 = arith.mulf %52, %53 : vector<1x8xf32>
    %cst_22 = arith.constant 2.000000e+00 : f32
    %55 = vector.broadcast %cst_22 : f32 to vector<1x8xf32>
    %56 = arith.subf %55, %54 : vector<1x8xf32>
    %57 = arith.mulf %53, %56 : vector<1x8xf32>
    %cst_23 = arith.constant 1.000000e+00 : f32
    %58 = vector.shape_cast %57 : vector<1x8xf32> to vector<1x8xf32>
    %59 = vector.broadcast %58 : vector<1x8xf32> to vector<35x8xf32>
    %60 = vector.broadcast %cst_23 : f32 to vector<35x8xf32>
    %61 = arith.select %32, %59, %60 : vector<35x8xi1>, vector<35x8xf32>
    %62 = arith.mulf %48, %61 : vector<35x8xf32>
    %63 = arith.select %37, %29, %62 : vector<35x8xi1>, vector<35x8xf32>
    %c0_24 = arith.constant 0 : index
    %c0_25 = arith.constant 0 : index
    %64 = vector.load %arg8[%c0_24, %c0_25] : memref<35x8xf32, #tpu.memory_space<vmem>>, vector<35x8xf32>
    tpu.vector_store %arg8[%c0_24, %c0_25], %63 {strides = array<i32>} : memref<35x8xf32, #tpu.memory_space<vmem>>, vector<35x8xf32>,
    return
  }
  func.func @transform_0(%arg0: i32) -> (i32, i32) {
    %c0_i32 = arith.constant 0 : i32
    %c0_i32_0 = arith.constant 0 : i32
    return %c0_i32, %arg0 : i32, i32
  }
  func.func @transform_1(%arg0: i32) -> (i32, i32) {
    %c0_i32 = arith.constant 0 : i32
    %c0_i32_0 = arith.constant 0 : i32
    %c0_i32_1 = arith.constant 0 : i32
    return %c0_i32, %c0_i32_0 : i32, i32
  }
  func.func @transform_2(%arg0: i32) -> (i32, i32) {
    %c0_i32 = arith.constant 0 : i32
    %c0_i32_0 = arith.constant 0 : i32
    %c0_i32_1 = arith.constant 0 : i32
    return %c0_i32, %c0_i32_0 : i32, i32
  }
  func.func @transform_3(%arg0: i32) -> (i32, i32) {
    %c0_i32 = arith.constant 0 : i32
    %c0_i32_0 = arith.constant 0 : i32
    %c0_i32_1 = arith.constant 0 : i32
    return %c0_i32, %c0_i32_0 : i32, i32
  }
  func.func @transform_4(%arg0: i32) -> (i32, i32) {
    %c0_i32 = arith.constant 0 : i32
    %c0_i32_0 = arith.constant 0 : i32
    %c0_i32_1 = arith.constant 0 : i32
    return %c0_i32, %c0_i32_0 : i32, i32
  }
  func.func @transform_5(%arg0: i32) -> (i32, i32) {
    %c0_i32 = arith.constant 0 : i32
    %c0_i32_0 = arith.constant 0 : i32
    %c0_i32_1 = arith.constant 0 : i32
    return %c0_i32, %c0_i32_0 : i32, i32
  }
  func.func @transform_6(%arg0: i32) -> (i32, i32) {
    %c0_i32 = arith.constant 0 : i32
    %c0_i32_0 = arith.constant 0 : i32
    %c0_i32_1 = arith.constant 0 : i32
    return %c0_i32, %c0_i32_0 : i32, i32
  }
  func.func @transform_7(%arg0: i32) -> (i32, i32) {
    %c0_i32 = arith.constant 0 : i32
    %c0_i32_0 = arith.constant 0 : i32
    return %c0_i32, %arg0 : i32, i32
  }
}

</mosaic_0001>

<llo_original>
// kernel: tpu_custom_call.1
$region0: #{tpu_custom_call.1}
  #allocation0 [shape = 'u32[]', space=smem, size = 0x4, offset = 0x4, fixed_abs, tag = 'smem constant byte address 0x4 - core index']
  #allocation1 [shape = 'u32[144,128]{1,0:T(1,128)}', space=vmem, size = 0x12000, scoped, tag = 'internal scratch']
  %s0 = inlined_call_operand.vmem [shape: f32[2,8], index: 0, kind: input, shape index: {}]
  %s1 = inlined_call_operand.vmem [shape: f32[32,2], index: 1, kind: input, shape index: {}]
  %s2 = inlined_call_operand.vmem [shape: f32[32,1], index: 2, kind: input, shape index: {}]
  %s3 = inlined_call_operand.vmem [shape: f32[32,32], index: 3, kind: input, shape index: {}]
  %s4 = inlined_call_operand.vmem [shape: f32[32,1], index: 4, kind: input, shape index: {}]
  %s5 = inlined_call_operand.vmem [shape: f32[35,32], index: 5, kind: input, shape index: {}]
  %s6 = inlined_call_operand.vmem [shape: f32[35,1], index: 6, kind: input, shape index: {}]
  %s7 = inlined_call_operand.vmem [shape: f32[35,8], index: 7, kind: output, shape index: {}]
  %s8 = sld [smem:[#allocation0]]
  $region38: #{tpu_custom_call.1} parent=0
    _
  %s10 = ssub.s32 1, %s8
  %s11 = scalar_select 0, %s10, %s8
  // Predicated region
  $region2: #{tpu_custom_call.1} parent=0 // pred_check
    _
  $region3: #{tpu_custom_call.1} parent=0 // pred_check_branch
    %13 = sbr.rel (0) target = $region5
  $region4: #{tpu_custom_call.1} parent=0 // pred_region
    _
  $region5: #{tpu_custom_call.1} parent=0 // pred_fallthru
    _
  // Predicated region
  $region6: #{tpu_custom_call.1} parent=0 // pred_check
    _
  $region7: #{tpu_custom_call.1} parent=0 // pred_check_branch
    %15 = sbr.rel (0) target = $region9
  $region8: #{tpu_custom_call.1} parent=0 // pred_region
    _
  $region9: #{tpu_custom_call.1} parent=0 // pred_fallthru
    _
  // Predicated region
  $region10: #{tpu_custom_call.1} parent=0 // pred_check
    _
  $region11: #{tpu_custom_call.1} parent=0 // pred_check_branch
    %17 = sbr.rel (0) target = $region13
  $region12: #{tpu_custom_call.1} parent=0 // pred_region
    _
  $region13: #{tpu_custom_call.1} parent=0 // pred_fallthru
    _
  // Predicated region
  $region14: #{tpu_custom_call.1} parent=0 // pred_check
    _
  $region15: #{tpu_custom_call.1} parent=0 // pred_check_branch
    %19 = sbr.rel (0) target = $region17
  $region16: #{tpu_custom_call.1} parent=0 // pred_region
    _
  $region17: #{tpu_custom_call.1} parent=0 // pred_fallthru
    _
  // Predicated region
  $region18: #{tpu_custom_call.1} parent=0 // pred_check
    _
  $region19: #{tpu_custom_call.1} parent=0 // pred_check_branch
    %21 = sbr.rel (0) target = $region21
  $region20: #{tpu_custom_call.1} parent=0 // pred_region
    _
  $region21: #{tpu_custom_call.1} parent=0 // pred_fallthru
    _
  // Predicated region
  $region22: #{tpu_custom_call.1} parent=0 // pred_check
    _
  $region23: #{tpu_custom_call.1} parent=0 // pred_check_branch
    %23 = sbr.rel (0) target = $region25
  $region24: #{tpu_custom_call.1} parent=0 // pred_region
    _
  $region25: #{tpu_custom_call.1} parent=0 // pred_fallthru
    _
  // Predicated region
  $region26: #{tpu_custom_call.1} parent=0 // pred_check
    _
  $region27: #{tpu_custom_call.1} parent=0 // pred_check_branch
    %25 = sbr.rel (0) target = $region29
  $region28: #{tpu_custom_call.1} parent=0 // pred_region
    _
  $region29: #{tpu_custom_call.1} parent=0 // pred_fallthru
    _
  %v26 = vld [vmem:[%s0] sm:$0x3]
  %v27 = vld [vmem:[%s1] sm:$0xff]
  %v28 = vld [vmem:[%s1 + $0x8] sm:$0xff]
  %v29 = vld [vmem:[%s1 + $0x10] sm:$0xff]
  %v30 = vld [vmem:[%s1 + $0x18] sm:$0xff]
  %32 = vset.pattern.permute.xlu0 0
  %33 = vperm.xlu0 %32, %v27
  %v34 = vpop.permute.xlu0 %33
  %37 = vset.pattern.permute.xlu0 0
  %38 = vperm.xlu0 %37, %v28
  %v39 = vpop.permute.xlu0 %38
  %42 = vset.pattern.permute.xlu0 0
  %43 = vperm.xlu0 %42, %v29
  %v44 = vpop.permute.xlu0 %43
  %47 = vset.pattern.permute.xlu0 0
  %48 = vperm.xlu0 %47, %v30
  %v49 = vpop.permute.xlu0 %48
  %v51 = vlaneseq
  %v52 = vshrl.u32 %v51, 7
  %v53 = vsub.s32 0, %v52
  %v54 = vrot.slane %v26, %v53
  %v55 = vmul.f32 %v34, %v54
  %v56 = vmul.f32 %v39, %v54
  %v57 = vmul.f32 %v44, %v54
  %v58 = vmul.f32 %v49, %v54
  %59 = vset.pattern.permute.xlu0 1
  %60 = vperm.xlu0 %59, %v27
  %v61 = vpop.permute.xlu0 %60
  %63 = vset.pattern.permute.xlu0 1
  %64 = vperm.xlu0 %63, %v28
  %v65 = vpop.permute.xlu0 %64
  %67 = vset.pattern.permute.xlu0 1
  %68 = vperm.xlu0 %67, %v29
  %v69 = vpop.permute.xlu0 %68
  %71 = vset.pattern.permute.xlu0 1
  %72 = vperm.xlu0 %71, %v30
  %v73 = vpop.permute.xlu0 %72
  %v75 = vlaneseq
  %v76 = vshrl.u32 %v75, 7
  %v77 = vsub.s32 1, %v76
  %v78 = vrot.slane %v26, %v77
  %v79 = vmul.f32 %v61, %v78
  %v80 = vmul.f32 %v65, %v78
  %v81 = vmul.f32 %v69, %v78
  %v82 = vmul.f32 %v73, %v78
  %v83 = vadd.f32 %v55, %v79
  %v84 = vadd.f32 %v56, %v80
  %v85 = vadd.f32 %v57, %v81
  %v86 = vadd.f32 %v58, %v82
  %v87 = vld [vmem:[%s2] sm:$0xff]
  %v88 = vld [vmem:[%s2 + $0x8] sm:$0xff]
  %v89 = vld [vmem:[%s2 + $0x10] sm:$0xff]
  %v90 = vld [vmem:[%s2 + $0x18] sm:$0xff]
  %92 = vset.pattern.permute.xlu0 0
  %93 = vperm.xlu0 %92, %v87
  %v94 = vpop.permute.xlu0 %93
  %97 = vset.pattern.permute.xlu0 0
  %98 = vperm.xlu0 %97, %v88
  %v99 = vpop.permute.xlu0 %98
  %102 = vset.pattern.permute.xlu0 0
  %103 = vperm.xlu0 %102, %v89
  %v104 = vpop.permute.xlu0 %103
  %107 = vset.pattern.permute.xlu0 0
  %108 = vperm.xlu0 %107, %v90
  %v109 = vpop.permute.xlu0 %108
  %v111 = vadd.f32 %v83, %v94
  %v112 = vadd.f32 %v84, %v99
  %v113 = vadd.f32 %v85, %v104
  %v114 = vadd.f32 %v86, %v109
  %v115 = vmax.f32 %v111, 0.0
  %v116 = vmax.f32 %v112, 0.0
  %v117 = vmax.f32 %v113, 0.0
  %v118 = vmax.f32 %v114, 0.0
  %v119 = vld [vmem:[%s3] sm:$0xff]
  %v120 = vld [vmem:[%s3 + $0x8] sm:$0xff]
  %v121 = vld [vmem:[%s3 + $0x10] sm:$0xff]
  %v122 = vld [vmem:[%s3 + $0x18] sm:$0xff]
  %v123 = vld [vmem:[%s4] sm:$0xff]
  %v124 = vld [vmem:[%s4 + $0x8] sm:$0xff]
  %v125 = vld [vmem:[%s4 + $0x10] sm:$0xff]
  %v126 = vld [vmem:[%s4 + $0x18] sm:$0xff]
  %128 = vset.pattern.permute.xlu0 0
  %129 = vperm.xlu0 %128, %v123
  %v130 = vpop.permute.xlu0 %129
  %133 = vset.pattern.permute.xlu0 0
  %134 = vperm.xlu0 %133, %v124
  %v135 = vpop.permute.xlu0 %134
  %138 = vset.pattern.permute.xlu0 0
  %139 = vperm.xlu0 %138, %v125
  %v140 = vpop.permute.xlu0 %139
  %143 = vset.pattern.permute.xlu0 0
  %144 = vperm.xlu0 %143, %v126
  %v145 = vpop.permute.xlu0 %144
  %vm147 = vcmask 261120
  %v149 = vsel %vm147, %v119, 0
  %v152 = vsel %vm147, %v120, 0
  %v155 = vsel %vm147, %v121, 0
  %v158 = vsel %vm147, %v122, 0
  %160 = vmatprep.subr.mxu0 0.0
  %161 = vmatpush1.msra.mxu0 0.0
  %162 = vmatprep.subr.mxu0 0.0
  %163 = vmatpush1.msra.mxu0 0.0
  %164 = vmatprep.subr.mxu0 0.0
  %165 = vmatpush1.msra.mxu0 0.0
  %166 = vmatprep.subr.mxu0 0.0
  %167 = vmatpush1.msra.mxu0 0.0
  %168 = vmatprep.subr.mxu0 0.0
  %169 = vmatpush1.msra.mxu0 0.0
  %170 = vmatprep.subr.mxu0 0.0
  %171 = vmatpush1.msra.mxu0 0.0
  %172 = vmatprep.subr.mxu0 0.0
  %173 = vmatpush1.msra.mxu0 0.0
  %174 = vmatprep.subr.mxu0 0.0
  %175 = vmatpush1.msra.mxu0 0.0
  %176 = vmatprep.subr.mxu0 0.0
  %177 = vmatpush1.msra.mxu0 0.0
  %178 = vmatprep.subr.mxu0 0.0
  %179 = vmatpush1.msra.mxu0 0.0
  %180 = vmatprep.subr.mxu0 0.0
  %181 = vmatpush1.msra.mxu0 0.0
  %182 = vmatprep.subr.mxu0 0.0
  %183 = vmatpush1.msra.mxu0 0.0
  %184 = vmatprep.subr.mxu0 0.0
  %185 = vmatpush1.msra.mxu0 %v118
  %186 = vmatprep.subr.mxu0 0.0
  %187 = vmatpush1.msra.mxu0 %v117
  %188 = vmatprep.subr.mxu0 0.0
  %189 = vmatpush1.msra.mxu0 %v116
  %190 = vmatprep.subr.mxu0 0.0
  %191 = vmatpush1.msra.mxu0 %v115
  %192 = vmatprep.subr.mxu0 0.0
  %193 = vmatpush2.msra.mxu0 0.0
  %194 = vmatprep.subr.mxu0 0.0
  %195 = vmatpush2.msra.mxu0 0.0
  %196 = vmatprep.subr.mxu0 0.0
  %197 = vmatpush2.msra.mxu0 0.0
  %198 = vmatprep.subr.mxu0 0.0
  %199 = vmatpush2.msra.mxu0 0.0
  %200 = vmatprep.subr.mxu0 0.0
  %201 = vmatpush2.msra.mxu0 0.0
  %202 = vmatprep.subr.mxu0 0.0
  %203 = vmatpush2.msra.mxu0 0.0
  %204 = vmatprep.subr.mxu0 0.0
  %205 = vmatpush2.msra.mxu0 0.0
  %206 = vmatprep.subr.mxu0 0.0
  %207 = vmatpush2.msra.mxu0 0.0
  %208 = vmatprep.subr.mxu0 0.0
  %209 = vmatpush2.msra.mxu0 0.0
  %210 = vmatprep.subr.mxu0 0.0
  %211 = vmatpush2.msra.mxu0 0.0
  %212 = vmatprep.subr.mxu0 0.0
  %213 = vmatpush2.msra.mxu0 0.0
  %214 = vmatprep.subr.mxu0 0.0
  %215 = vmatpush2.msra.mxu0 0.0
  %216 = vmatprep.subr.mxu0 0.0
  %217 = vmatpush2.msra.mxu0 0.0
  %218 = vmatprep.subr.mxu0 0.0
  %219 = vmatpush2.msra.mxu0 0.0
  %220 = vmatprep.subr.mxu0 0.0
  %221 = vmatpush2.msra.mxu0 0.0
  %222 = vmatprep.subr.mxu0 0.0
  %223 = vmatpush2.msra.mxu0 0.0
  %224 = vmatprep.mubr.f32.mxu0 0.0
  %225 = vmatmul.mubr.f32.gmra.mxu0 %v149
  %v226 = vpop.f32.mrf.mxu0
  %v227 = vadd.f32 %v130, %v226
  %v228 = vpop.f32.mrf.mxu0
  %229 = vmatprep.mubr.f32.mxu0 0.0
  %230 = vmatmul.mubr.f32.gmra.mxu0 %v152
  %v231 = vpop.f32.mrf.mxu0
  %v232 = vadd.f32 %v135, %v231
  %v233 = vpop.f32.mrf.mxu0
  %234 = vmatprep.mubr.f32.mxu0 0.0
  %235 = vmatmul.mubr.f32.gmra.mxu0 %v155
  %v236 = vpop.f32.mrf.mxu0
  %v237 = vadd.f32 %v140, %v236
  %v238 = vpop.f32.mrf.mxu0
  %239 = vmatprep.mubr.f32.mxu0 0.0
  %240 = vmatmul.mubr.f32.gmra.mxu0 %v158
  %v241 = vpop.f32.mrf.mxu0
  %v242 = vadd.f32 %v145, %v241
  %v243 = vpop.f32.mrf.mxu0
  %244 = vdwg.mxu0
  %v245 = vmax.f32 %v227, 0.0
  %v246 = vmax.f32 %v232, 0.0
  %v247 = vmax.f32 %v237, 0.0
  %v248 = vmax.f32 %v242, 0.0
  %v249 = vld [vmem:[%s5] sm:$0xff]
  %v250 = vld [vmem:[%s5 + $0x8] sm:$0xff]
  %v251 = vld [vmem:[%s5 + $0x10] sm:$0xff]
  %v252 = vld [vmem:[%s5 + $0x18] sm:$0xff]
  %v253 = vld [vmem:[%s5 + $0x20] sm:$0x7]
  %v254 = vld [vmem:[%s6] sm:$0xff]
  %v255 = vld [vmem:[%s6 + $0x8] sm:$0xff]
  %v256 = vld [vmem:[%s6 + $0x10] sm:$0xff]
  %v257 = vld [vmem:[%s6 + $0x18] sm:$0xff]
  %v258 = vld [vmem:[%s6 + $0x20] sm:$0x7]
  %260 = vset.pattern.permute.xlu0 0
  %261 = vperm.xlu0 %260, %v254
  %v262 = vpop.permute.xlu0 %261
  %265 = vset.pattern.permute.xlu0 0
  %266 = vperm.xlu0 %265, %v255
  %v267 = vpop.permute.xlu0 %266
  %270 = vset.pattern.permute.xlu0 0
  %271 = vperm.xlu0 %270, %v256
  %v272 = vpop.permute.xlu0 %271
  %275 = vset.pattern.permute.xlu0 0
  %276 = vperm.xlu0 %275, %v257
  %v277 = vpop.permute.xlu0 %276
  %280 = vset.pattern.permute.xlu0 0
  %281 = vperm.xlu0 %280, %v258
  %v282 = vpop.permute.xlu0 %281
  %v285 = vsel %vm147, %v249, 0
  %v288 = vsel %vm147, %v250, 0
  %v291 = vsel %vm147, %v251, 0
  %v294 = vsel %vm147, %v252, 0
  %v297 = vsel %vm147, %v253, 0
  %299 = vmatprep.subr.mxu0 0.0
  %300 = vmatpush1.msra.mxu0 0.0
  %301 = vmatprep.subr.mxu0 0.0
  %302 = vmatpush1.msra.mxu0 0.0
  %303 = vmatprep.subr.mxu0 0.0
  %304 = vmatpush1.msra.mxu0 0.0
  %305 = vmatprep.subr.mxu0 0.0
  %306 = vmatpush1.msra.mxu0 0.0
  %307 = vmatprep.subr.mxu0 0.0
  %308 = vmatpush1.msra.mxu0 0.0
  %309 = vmatprep.subr.mxu0 0.0
  %310 = vmatpush1.msra.mxu0 0.0
  %311 = vmatprep.subr.mxu0 0.0
  %312 = vmatpush1.msra.mxu0 0.0
  %313 = vmatprep.subr.mxu0 0.0
  %314 = vmatpush1.msra.mxu0 0.0
  %315 = vmatprep.subr.mxu0 0.0
  %316 = vmatpush1.msra.mxu0 0.0
  %317 = vmatprep.subr.mxu0 0.0
  %318 = vmatpush1.msra.mxu0 0.0
  %319 = vmatprep.subr.mxu0 0.0
  %320 = vmatpush1.msra.mxu0 0.0
  %321 = vmatprep.subr.mxu0 0.0
  %322 = vmatpush1.msra.mxu0 0.0
  %323 = vmatprep.subr.mxu0 0.0
  %324 = vmatpush1.msra.mxu0 %v248
  %325 = vmatprep.subr.mxu0 0.0
  %326 = vmatpush1.msra.mxu0 %v247
  %327 = vmatprep.subr.mxu0 0.0
  %328 = vmatpush1.msra.mxu0 %v246
  %329 = vmatprep.subr.mxu0 0.0
  %330 = vmatpush1.msra.mxu0 %v245
  %331 = vmatprep.subr.mxu0 0.0
  %332 = vmatpush2.msra.mxu0 0.0
  %333 = vmatprep.subr.mxu0 0.0
  %334 = vmatpush2.msra.mxu0 0.0
  %335 = vmatprep.subr.mxu0 0.0
  %336 = vmatpush2.msra.mxu0 0.0
  %337 = vmatprep.subr.mxu0 0.0
  %338 = vmatpush2.msra.mxu0 0.0
  %339 = vmatprep.subr.mxu0 0.0
  %340 = vmatpush2.msra.mxu0 0.0
  %341 = vmatprep.subr.mxu0 0.0
  %342 = vmatpush2.msra.mxu0 0.0
  %343 = vmatprep.subr.mxu0 0.0
  %344 = vmatpush2.msra.mxu0 0.0
  %345 = vmatprep.subr.mxu0 0.0
  %346 = vmatpush2.msra.mxu0 0.0
  %347 = vmatprep.subr.mxu0 0.0
  %348 = vmatpush2.msra.mxu0 0.0
  %349 = vmatprep.subr.mxu0 0.0
  %350 = vmatpush2.msra.mxu0 0.0
  %351 = vmatprep.subr.mxu0 0.0
  %352 = vmatpush2.msra.mxu0 0.0
  %353 = vmatprep.subr.mxu0 0.0
  %354 = vmatpush2.msra.mxu0 0.0
  %355 = vmatprep.subr.mxu0 0.0
  %356 = vmatpush2.msra.mxu0 0.0
  %357 = vmatprep.subr.mxu0 0.0
  %358 = vmatpush2.msra.mxu0 0.0
  %359 = vmatprep.subr.mxu0 0.0
  %360 = vmatpush2.msra.mxu0 0.0
  %361 = vmatprep.subr.mxu0 0.0
  %362 = vmatpush2.msra.mxu0 0.0
  %363 = vmatprep.mubr.f32.mxu0 0.0
  %364 = vmatmul.mubr.f32.gmra.mxu0 %v285
  %v365 = vpop.f32.mrf.mxu0
  %v366 = vadd.f32 %v262, %v365
  %v367 = vpop.f32.mrf.mxu0
  %368 = vmatprep.mubr.f32.mxu0 0.0
  %369 = vmatmul.mubr.f32.gmra.mxu0 %v288
  %v370 = vpop.f32.mrf.mxu0
  %v371 = vadd.f32 %v267, %v370
  %v372 = vpop.f32.mrf.mxu0
  %373 = vmatprep.mubr.f32.mxu0 0.0
  %374 = vmatmul.mubr.f32.gmra.mxu0 %v291
  %v375 = vpop.f32.mrf.mxu0
  %v376 = vadd.f32 %v272, %v375
  %v377 = vpop.f32.mrf.mxu0
  %378 = vmatprep.mubr.f32.mxu0 0.0
  %379 = vmatmul.mubr.f32.gmra.mxu0 %v294
  %v380 = vpop.f32.mrf.mxu0
  %v381 = vadd.f32 %v277, %v380
  %v382 = vpop.f32.mrf.mxu0
  %383 = vmatprep.mubr.f32.mxu0 0.0
  %384 = vmatmul.mubr.f32.gmra.mxu0 %v297
  %v385 = vpop.f32.mrf.mxu0
  %v386 = vadd.f32 %v282, %v385
  %v387 = vpop.f32.mrf.mxu0
  %388 = vdwg.mxu0
  %v389 = vlaneseq
  %v390 = vshrl.u32 %v389, 7
  %v391 = vadd.s32 %v390, 8
  %v392 = vadd.s32 %v390, 16
  %v393 = vadd.s32 %v390, 24
  %v394 = vadd.s32 %v390, 32
  %vm395 = vcmp.lt.s32.totalorder %v390, 5
  %vm396 = vcmp.lt.s32.totalorder %v391, 5
  %vm397 = vcmp.lt.s32.totalorder %v392, 5
  %vm398 = vcmp.lt.s32.totalorder %v393, 5
  %vm399 = vcmp.lt.s32.totalorder %v394, 5
  %vm400 = vcmp.ge.s32.totalorder %v390, 5
  %vm401 = vcmp.ge.s32.totalorder %v391, 5
  %vm402 = vcmp.ge.s32.totalorder %v392, 5
  %vm403 = vcmp.ge.s32.totalorder %v393, 5
  %vm404 = vcmp.ge.s32.totalorder %v394, 5
  %vm405 = vcmp.lt.s32.totalorder %v390, 20
  %vm406 = vcmp.lt.s32.totalorder %v391, 20
  %vm407 = vcmp.lt.s32.totalorder %v392, 20
  %vm408 = vcmp.lt.s32.totalorder %v393, 20
  %vm409 = vcmp.lt.s32.totalorder %v394, 20
  %vm410 = vmand %vm400, %vm405
  %vm411 = vmand %vm401, %vm406
  %vm412 = vmand %vm402, %vm407
  %vm413 = vmand %vm403, %vm408
  %vm414 = vmand %vm404, %vm409
  %v415 = vsel %vm395, %v366, -inf
  %v416 = vsel %vm396, %v371, -inf
  %v417 = vsel %vm397, %v376, -inf
  %v418 = vsel %vm398, %v381, -inf
  %v419 = vsel %vm399, %v386, -inf
  %vm420 = vcmask 64512
  %v421 = vsel %vm420, %v415, -inf
  %v422 = vsel %vm420, %v416, -inf
  %v423 = vsel %vm420, %v417, -inf
  %v424 = vsel %vm420, %v418, -inf
  %vm425 = vcmask 59392
  %v426 = vsel %vm425, %v419, -inf
  %v427 = vmax.f32 %v421, %v426
  %v428 = vmax.f32 %v427, %v422
  %v429 = vmax.f32 %v423, %v424
  %v430 = vmax.f32 %v428, %v429
  %v431 = vrot.slane %v430, 4
  %v432 = vmax.f32 %v430, %v431
  %v433 = vrot.slane %v432, 2
  %v434 = vmax.f32 %v432, %v433
  %v435 = vrot.slane %v434, 1
  %v436 = vmax.f32 %v434, %v435
  %v437 = vsel %vm410, %v366, 0.0
  %v438 = vsel %vm411, %v371, 0.0
  %v439 = vsel %vm412, %v376, 0.0
  %v440 = vsel %vm413, %v381, 0.0
  %v441 = vsel %vm414, %v386, 0.0
  %v442 = vsel %vm395, %v436, %v437
  %v443 = vsel %vm396, %v436, %v438
  %v444 = vsel %vm397, %v436, %v439
  %v445 = vsel %vm398, %v436, %v440
  %v446 = vsel %vm399, %v436, %v441
  %v447 = vsub.f32 %v366, %v442
  %v448 = vsub.f32 %v371, %v443
  %v449 = vsub.f32 %v376, %v444
  %v450 = vsub.f32 %v381, %v445
  %v451 = vsub.f32 %v386, %v446
  %v452 = vmul.f32 %v447, 1.442695
  %v453 = vpow.pop %v452
  %v454 = vmul.f32 %v448, 1.442695
  %v455 = vpow.pop %v454
  %v456 = vmul.f32 %v449, 1.442695
  %v457 = vpow.pop %v456
  %v458 = vmul.f32 %v450, 1.442695
  %v459 = vpow.pop %v458
  %v460 = vmul.f32 %v451, 1.442695
  %v461 = vpow.pop %v460
  %v462 = vsel %vm395, %v453, 0.0
  %v463 = vsel %vm396, %v455, 0.0
  %v464 = vsel %vm397, %v457, 0.0
  %v465 = vsel %vm398, %v459, 0.0
  %v466 = vsel %vm399, %v461, 0.0
  %v467 = vsel %vm420, %v462, 0.0
  %v468 = vsel %vm420, %v463, 0.0
  %v469 = vadd.f32 %v467, %v468
  %v470 = vsel %vm420, %v464, 0.0
  %v471 = vadd.f32 %v469, %v470
  %v472 = vsel %vm420, %v465, 0.0
  %v473 = vadd.f32 %v471, %v472
  %v474 = vsel %vm425, %v466, 0.0
  %v475 = vadd.f32 %v473, %v474
  %v476 = vrot.slane %v475, 4
  %v477 = vadd.f32 %v475, %v476
  %v478 = vrot.slane %v477, 2
  %v479 = vadd.f32 %v477, %v478
  %v480 = vrot.slane %v479, 1
  %v481 = vadd.f32 %v479, %v480
  %v482 = vrcp.pop %v481
  %v483 = vmul.f32 %v481, %v482
  %v484 = vsub.f32 2.0, %v483
  %v485 = vmul.f32 %v482, %v484
  %v486 = vsel %vm395, %v485, 1.0
  %v487 = vsel %vm396, %v485, 1.0
  %v488 = vsel %vm397, %v485, 1.0
  %v489 = vsel %vm398, %v485, 1.0
  %v490 = vsel %vm399, %v485, 1.0
  %v491 = vmul.f32 %v453, %v486
  %v492 = vmul.f32 %v455, %v487
  %v493 = vmul.f32 %v457, %v488
  %v494 = vmul.f32 %v459, %v489
  %v495 = vmul.f32 %v461, %v490
  %v496 = vsel %vm410, %v366, %v491
  %v497 = vsel %vm411, %v371, %v492
  %v498 = vsel %vm412, %v376, %v493
  %v499 = vsel %vm413, %v381, %v494
  %v500 = vsel %vm414, %v386, %v495
  %501 = vst.msk [vmem:[%s7] sm:$0xff] %vm420, %v496
  %502 = vst.msk [vmem:[%s7 + $0x8] sm:$0xff] %vm420, %v497
  %503 = vst.msk [vmem:[%s7 + $0x10] sm:$0xff] %vm420, %v498
  %504 = vst.msk [vmem:[%s7 + $0x18] sm:$0xff] %vm420, %v499
  %505 = vst.msk [vmem:[%s7 + $0x20] sm:$0x7] %vm425, %v500
  // Predicated region
  $region30: #{tpu_custom_call.1} parent=0 // pred_check
    _
  $region31: #{tpu_custom_call.1} parent=0 // pred_check_branch
    %507 = sbr.rel (0) target = $region33
  $region32: #{tpu_custom_call.1} parent=0 // pred_region
    _
  $region33: #{tpu_custom_call.1} parent=0 // pred_fallthru
    _
  // Predicated region
  $region34: #{tpu_custom_call.1} parent=0 // pred_check
    _
  $region35: #{tpu_custom_call.1} parent=0 // pred_check_branch
    %509 = sbr.rel (0) target = $region37
  $region36: #{tpu_custom_call.1} parent=0 // pred_region
    _
  $region37: #{tpu_custom_call.1} parent=0 // pred_fallthru
    _

</llo_original>
